<compile_context>
chip_gen: v7x
topology: tpu7x:2x2x1
jax: 0.10.0
libtpu: 0.0.40
codegen_flags: <defaults>
</compile_context>

<pallas_src>
import functools

import jax
import jax.numpy as jnp
import numpy as np
from jax.experimental import pallas as pl
from jax.experimental.pallas import tpu as pltpu


# 3x3 tap order; must match the weight packing and the mask-row order.
_TAPS = [(-1, -1), (-1, 0), (-1, 1),
         (0, -1), (0, 0), (0, 1),
         (1, -1), (1, 0), (1, 1)]


# -----------------------------------------------------------------------------
# pltpu.roll direction probe (makes the kernel independent of the roll
# convention: +1 means pltpu.roll matches jnp.roll semantics).
# -----------------------------------------------------------------------------
_ROLL_SIGN = None


def _roll_sign():
    global _ROLL_SIGN
    if _ROLL_SIGN is None:
        def probe_kernel(x_ref, o_ref):
            o_ref[...] = pltpu.roll(x_ref[...], 1, 1)

        x = jnp.arange(8 * 128, dtype=jnp.float32).reshape(8, 128)
        r = pl.pallas_call(
            probe_kernel,
            out_shape=jax.ShapeDtypeStruct((8, 128), jnp.float32),
        )(x)
        _ROLL_SIGN = 1 if bool(r[0, 1] == x[0, 0]) else -1
    return _ROLL_SIGN


# -----------------------------------------------------------------------------
# In-kernel helpers (values laid out as (C, B*P): channels on sublanes,
# B images stacked along the flattened-spatial lane axis).
# -----------------------------------------------------------------------------
def _shift_flat(a, s, sign):
    """Cyclic shift over the whole batched lane axis: b[:, p] = a[:, (p+s) % L]."""
    n = a.shape[-1]
    amt = (-s * sign) % n
    if amt == 0:
        return a
    return pltpu.roll(a, amt, 1)


def _conv3x3(a, w_ref, b_ref, W, mask, sign, relu=True):
    """3x3 'same' conv: a (Cin, B*P) f32 -> (Cout, B*P) f32.

    Builds a (9*Cin, B*P) im2col patch from masked cyclic lane shifts and issues
    one bf16 MXU matmul with f32 accumulation; bias + ReLU epilogue in f32.
    Cross-image wraparound taps land only on positions the edge masks zero.
    """
    cols = []
    mrow = 0
    for dh, dw in _TAPS:
        piece = _shift_flat(a, dh * W + dw, sign).astype(jnp.bfloat16)
        if (dh, dw) != (0, 0):
            piece = piece * mask[mrow:mrow + 1, :]
            mrow += 1
        cols.append(piece)
    patch = jnp.concatenate(cols, axis=0)                          # (9*Cin, B*P)
    acc = jnp.dot(w_ref[...], patch, preferred_element_type=jnp.float32)
    acc = acc + b_ref[...]
    return jnp.maximum(acc, 0.0) if relu else acc


def _maxpool2x2(a, W, sel, B, p_in, sign):
    """2x2 / stride-2 max pool: (C, B*p_in) -> (C, B*p_out).

    VPU max of shifted copies, then a per-image bf16 0/1 selection matmul
    (exact compaction of the even-(h, w) anchors), linear in B.
    """
    m = a
    for s in (1, W, W + 1):
        m = jnp.maximum(m, _shift_flat(a, s, sign))
    pieces = []
    for b in range(B):
        mb = m[:, b * p_in:(b + 1) * p_in].astype(jnp.bfloat16)
        pieces.append(jnp.dot(mb, sel, preferred_element_type=jnp.float32))
    return pieces[0] if B == 1 else jnp.concatenate(pieces, axis=1)


def _upsample2x(a, up, B, p_in):
    """Nearest 2x upsample via per-image bf16 0/1 selection matmuls."""
    pieces = []
    for b in range(B):
        ab = a[:, b * p_in:(b + 1) * p_in].astype(jnp.bfloat16)
        pieces.append(jnp.dot(ab, up, preferred_element_type=jnp.float32))
    return pieces[0] if B == 1 else jnp.concatenate(pieces, axis=1)


# -----------------------------------------------------------------------------
# Fused UNet kernel: one grid step == B batch elements, everything in VMEM.
# -----------------------------------------------------------------------------
def _unet_kernel(x_ref, m32_ref, m16_ref, m8_ref,
                 pool1_ref, pool2_ref, up2_ref, up1_ref,
                 *rest, sign, B, n_out):
    o_ref = rest[-1]
    wb = rest[:-1]
    w = [wb[2 * i] for i in range(10)]
    b = [wb[2 * i + 1] for i in range(10)]
    wo_ref, bo_ref = wb[20], wb[21]

    m32 = m32_ref[...]
    m16 = m16_ref[...]
    m8 = m8_ref[...]
    pool1 = pool1_ref[...]
    pool2 = pool2_ref[...]
    up2 = up2_ref[...]
    up1 = up1_ref[...]

    x = x_ref[0]                                                   # (8, B*1024)

    # encoder level 0 (32x32)
    e1 = _conv3x3(x, w[0], b[0], 32, m32, sign)
    e1 = _conv3x3(e1, w[1], b[1], 32, m32, sign)                   # (8, B*1024)

    # encoder level 1 (16x16)
    p1 = _maxpool2x2(e1, 32, pool1, B, 1024, sign)                 # (8, B*256)
    e2 = _conv3x3(p1, w[2], b[2], 16, m16, sign)
    e2 = _conv3x3(e2, w[3], b[3], 16, m16, sign)                   # (16, B*256)

    # bottleneck level 2 (8x8; 128 lanes/image, first 64 valid, rest zero-pad)
    p2 = _maxpool2x2(e2, 16, pool2, B, 256, sign)                  # (16, B*128)
    e3 = _conv3x3(p2, w[4], b[4], 8, m8, sign)
    e3 = _conv3x3(e3, w[5], b[5], 8, m8, sign)                     # (32, B*128)

    # decoder level 1: nearest 2x upsample + skip concat in VMEM
    u2 = _upsample2x(e3, up2, B, 128)                              # (32, B*256)
    d2 = jnp.concatenate([u2, e2], axis=0)                         # (48, B*256)
    d2 = _conv3x3(d2, w[6], b[6], 16, m16, sign)
    d2 = _conv3x3(d2, w[7], b[7], 16, m16, sign)                   # (16, B*256)

    # decoder level 0
    u1 = _upsample2x(d2, up1, B, 256)                              # (16, B*1024)
    d1 = jnp.concatenate([u1, e1], axis=0)                         # (24, B*1024)
    d1 = _conv3x3(d1, w[8], b[8], 32, m32, sign)
    d1 = _conv3x3(d1, w[9], b[9], 32, m32, sign)                   # (8, B*1024)

    # final 1x1 conv (no ReLU) on the VPU: broadcast-mul + sublane sum
    wo = wo_ref[...]                                               # (8, n_out) f32
    bo = bo_ref[...]                                               # (n_out, 1) f32
    rows = [jnp.sum(d1 * wo[:, n:n + 1], axis=0, keepdims=True)
            for n in range(n_out)]
    out = rows[0] if n_out == 1 else jnp.concatenate(rows, axis=0)
    o_ref[0] = out + bo


# -----------------------------------------------------------------------------
# Host-side constant builders (masks and 0/1 selection matrices).
# -----------------------------------------------------------------------------
def _tap_mask_array(H, W, p_lane, B):
    """(8, B*p_lane) bf16 validity masks for the 8 non-center taps (dest-indexed)."""
    p_valid = H * W
    idx = np.arange(p_lane)
    h, ww = idx // W, idx % W
    in_img = idx < p_valid
    rows = []
    for dh, dw in _TAPS:
        if (dh, dw) == (0, 0):
            continue
        ok = in_img & (h + dh >= 0) & (h + dh < H) & (ww + dw >= 0) & (ww + dw < W)
        rows.append(ok.astype(np.float32))
    m = np.tile(np.stack(rows, 0), (1, B))
    return jnp.asarray(m, dtype=jnp.bfloat16)


def _pool_select_matrix(H, W, pad_to=None):
    Hc, Wc = H // 2, W // 2
    P, Pc = H * W, Hc * Wc
    S = np.zeros((P, pad_to or Pc), np.float32)
    q = np.arange(Pc)
    p = 2 * (q // Wc) * W + 2 * (q % Wc)
    S[p, q] = 1.0
    return jnp.asarray(S, dtype=jnp.bfloat16)


def _upsample_matrix(Hc, Wc, pad_from=None):
    H, W = 2 * Hc, 2 * Wc
    P, Pc = H * W, Hc * Wc
    U = np.zeros((pad_from or Pc, P), np.float32)
    pf = np.arange(P)
    src = (pf // W // 2) * Wc + (pf % W) // 2
    U[src, pf] = 1.0
    return jnp.asarray(U, dtype=jnp.bfloat16)


# -----------------------------------------------------------------------------
# Parameters (deterministic synthetic init) and forward pass wrapper.
# -----------------------------------------------------------------------------
def _conv_params(key, kh, kw, cin, cout):
    wk, bk = jax.random.split(key)
    scale = (2.0 / (kh * kw * cin)) ** 0.5
    w = scale * jax.random.normal(wk, (kh, kw, cin, cout), jnp.float32)
    b = 0.02 * jax.random.normal(bk, (cout,), jnp.float32)
    return {"w": w, "b": b}


def init_unet_params(key, in_ch=3, base=8, n_classes=1):
    ks = jax.random.split(key, 11)
    c1, c2, c3 = base, base * 2, base * 4
    return {
        "inc":   [_conv_params(ks[0], 3, 3, in_ch, c1), _conv_params(ks[1], 3, 3, c1, c1)],
        "down1": [_conv_params(ks[2], 3, 3, c1, c2), _conv_params(ks[3], 3, 3, c2, c2)],
        "down2": [_conv_params(ks[4], 3, 3, c2, c3), _conv_params(ks[5], 3, 3, c3, c3)],
        "up1":   [_conv_params(ks[6], 3, 3, c3 + c2, c2), _conv_params(ks[7], 3, 3, c2, c2)],
        "up2":   [_conv_params(ks[8], 3, 3, c2 + c1, c1), _conv_params(ks[9], 3, 3, c1, c1)],
        "outc":  _conv_params(ks[10], 1, 1, c1, n_classes),
    }


def unet_forward(params, x_nchw, images_per_step=4):
    """Fused Pallas forward: (N, 3, 32, 32) f32 -> (N, n_classes, 32, 32) f32."""
    N, C, H, W = x_nchw.shape
    assert (H, W) == (32, 32) and C <= 8, "kernel is specialized to <=8ch 32x32 inputs"
    P = H * W
    cpad = 8
    n_out = params["outc"]["w"].shape[-1]

    B = max(1, min(images_per_step, N))          # images per grid step (lane-stacked)
    G = -(-N // B)
    n_pad = G * B

    # network input -> (G, 8, B*P): channels zero-padded, B images per lane row
    x = x_nchw.reshape(N, C, P).astype(jnp.float32)
    if C < cpad:
        x = jnp.pad(x, ((0, 0), (0, cpad - C), (0, 0)))
    if n_pad > N:
        x = jnp.pad(x, ((0, n_pad - N), (0, 0), (0, 0)))
    x = x.reshape(G, B, cpad, P).transpose(0, 2, 1, 3).reshape(G, cpad, B * P)

    # pack each 3x3 conv weight into im2col form (Cout, 9*Cin) bf16, bias (Cout,1) f32
    def pack(p, cin_pad=None):
        wgt = p["w"]
        if cin_pad is not None and wgt.shape[2] < cin_pad:
            wgt = jnp.pad(wgt, ((0, 0), (0, 0), (0, cin_pad - wgt.shape[2]), (0, 0)))
        kh, kw, ci, co = wgt.shape
        wp = jnp.transpose(wgt, (3, 0, 1, 2)).reshape(co, kh * kw * ci)
        return [wp.astype(jnp.bfloat16), p["b"].reshape(co, 1).astype(jnp.float32)]

    blocks = (params["inc"] + params["down1"] + params["down2"]
              + params["up1"] + params["up2"])
    wb = []
    for i, blk in enumerate(blocks):
        wb += pack(blk, cin_pad=cpad if i == 0 else None)
    wo = params["outc"]["w"][0, 0].astype(jnp.float32)             # (8, n_out)
    bo = params["outc"]["b"].reshape(n_out, 1).astype(jnp.float32)  # (n_out, 1)

    # hoisted constants: per-resolution tap masks + bf16 0/1 pool / upsample matrices
    mask32 = _tap_mask_array(32, 32, 1024, B)
    mask16 = _tap_mask_array(16, 16, 256, B)
    mask8 = _tap_mask_array(8, 8, 128, B)          # 8x8 level padded to 128 lanes/img
    pool1 = _pool_select_matrix(32, 32)                   # (1024, 256)
    pool2 = _pool_select_matrix(16, 16, pad_to=128)       # (256, 128)
    up2 = _upsample_matrix(8, 8, pad_from=128)            # (128, 256)
    up1 = _upsample_matrix(16, 16)                        # (256, 1024)

    inputs = [x, mask32, mask16, mask8, pool1, pool2, up2, up1] + wb + [wo, bo]
    in_specs = [pl.BlockSpec((1, cpad, B * P), lambda g: (g, 0, 0))]
    in_specs += [pl.BlockSpec(a.shape, lambda g: (0, 0)) for a in inputs[1:]]

    kernel = functools.partial(_unet_kernel, sign=_roll_sign(), B=B, n_out=n_out)

    out = pl.pallas_call(
        kernel,
        out_shape=jax.ShapeDtypeStruct((G, n_out, B * P), jnp.float32),
        grid=(G,),
        in_specs=in_specs,
        out_specs=pl.BlockSpec((1, n_out, B * P), lambda g: (g, 0, 0)),
        compiler_params=pltpu.CompilerParams(
            dimension_semantics=("parallel",),        # grid steps split across TCs on v7x
            vmem_limit_bytes=32 * 1024 * 1024),
    )(*inputs)

    out = (out.reshape(G, n_out, B, P).transpose(0, 2, 1, 3)
              .reshape(G * B, n_out, P)[:N].reshape(N, n_out, H, W))
    return out


# -----------------------------------------------------------------------------
# Pure-JAX reference (same bf16 conv-input/weight quantization, f32 accumulation)
# -----------------------------------------------------------------------------
def unet_reference(params, x_nchw):
    def conv(x, p, relu=True):
        y = jax.lax.conv_general_dilated(
            x.astype(jnp.bfloat16), p["w"].astype(jnp.bfloat16),
            window_strides=(1, 1), padding="SAME",
            dimension_numbers=("NHWC", "HWIO", "NHWC"),
            preferred_element_type=jnp.float32)
        y = y + p["b"].reshape(1, 1, 1, -1)
        return jnp.maximum(y, 0.0) if relu else y

    def double_conv(x, ps):
        for p in ps:
            x = conv(x, p)
        return x

    def pool(x):
        return jax.lax.reduce_window(x, -jnp.inf, jax.lax.max,
                                     (1, 2, 2, 1), (1, 2, 2, 1), "VALID")

    def up(x):
        return jnp.repeat(jnp.repeat(x, 2, axis=1), 2, axis=2)

    x = jnp.transpose(x_nchw, (0, 2, 3, 1))
    e1 = double_conv(x, params["inc"])
    e2 = double_conv(pool(e1), params["down1"])
    e3 = double_conv(pool(e2), params["down2"])
    d2 = double_conv(jnp.concatenate([up(e3), e2], axis=-1), params["up1"])
    d1 = double_conv(jnp.concatenate([up(d2), e1], axis=-1), params["up2"])
    out = conv(d1, params["outc"], relu=False)
    return jnp.transpose(out, (0, 3, 1, 2))


if __name__ == "__main__":
    key = jax.random.PRNGKey(0)
    pkey, xkey = jax.random.split(key)

    x = jax.random.normal(xkey, (8, 3, 32, 32), jnp.float32)
    params = init_unet_params(pkey, in_ch=3, base=8, n_classes=1)

    _roll_sign()  # run the tiny roll-convention probe once, eagerly, before jit

    fwd = jax.jit(functools.partial(unet_forward, images_per_step=4))
    y = jax.block_until_ready(fwd(params, x))
    assert y.shape == (8, 1, 32, 32), y.shape
    assert bool(jnp.all(jnp.isfinite(y)))

    # structural-correctness check against an XLA reference with matching
    # bf16 conv-input quantization (loose tolerance absorbs bf16 noise).
    y_ref = jax.block_until_ready(jax.jit(unet_reference)(params, x))
    np.testing.assert_allclose(np.asarray(y), np.asarray(y_ref), rtol=0.1, atol=0.1)

    print("KERNEL_OK")
</pallas_src>

<mosaic_0001>
module attributes {stable_mosaic.version = 11 : i64} {
  func.func @probe_kernel(%arg0: memref<8x128xf32, #tpu.memory_space<vmem>>, %arg1: memref<8x128xf32, #tpu.memory_space<vmem>>) attributes {dimension_semantics = [], scalar_prefetch = 0 : i64, scratch_operands = 0 : i64, tpu.core_type = #tpu.core_type<tc>} {
    %c0 = arith.constant 0 : index
    %c0_0 = arith.constant 0 : index
    %0 = vector.load %arg0[%c0, %c0_0] : memref<8x128xf32, #tpu.memory_space<vmem>>, vector<8x128xf32>
    %c1_i32 = arith.constant 1 : i32
    %1 = tpu.dynamic_rotate %0 by %c1_i32 dim 1 : vector<8x128xf32>, i32 -> vector<8x128xf32>
    %c0_1 = arith.constant 0 : index
    %c0_2 = arith.constant 0 : index
    %2 = vector.load %arg1[%c0_1, %c0_2] : memref<8x128xf32, #tpu.memory_space<vmem>>, vector<8x128xf32>
    tpu.vector_store %arg1[%c0_1, %c0_2], %1 {strides = array<i32>} : memref<8x128xf32, #tpu.memory_space<vmem>>, vector<8x128xf32>,
    return
  }
}

</mosaic_0001>

<llo_original>
// kernel: tpu_custom_call.1
$region0: #{tpu_custom_call.1}
  #allocation0 [shape = 'u32[]', space=smem, size = 0x4, offset = 0x4, fixed_abs, tag = 'smem constant byte address 0x4 - core index']
  #allocation1 [shape = 'u32[144,128]{1,0:T(1,128)}', space=vmem, size = 0x12000, scoped, tag = 'internal scratch']
  %s0 = inlined_call_operand.hbm [shape: f32[8,128], index: 0, kind: input, shape index: {}]
  %s1 = inlined_call_operand.hbm [shape: f32[8,128], index: 1, kind: output, shape index: {}]
  %s2 = sld [smem:[#allocation0]]
  $region18: #{tpu_custom_call.1} parent=0
    _
  %s4 = ssub.s32 1, %s2
  %s5 = scalar_select 0, %s4, %s2
  $region1: #{tpu_custom_call.1} parent=0
    #allocation2 [shape = 'u8[4096]{0}', space=vmem, size = 0x1000, scoped, tag = 'input window, operand 0, single buffered']
    #allocation3 [shape = 's32[1]{0}', space=sflag, size = 0x4, scoped, tag = 'scoped memory for tpu_custom_call.1']
    #allocation4 [shape = 's32[1]{0}', space=sflag, size = 0x4, scoped, tag = 'scoped memory for tpu_custom_call.1']
    #allocation5 [shape = 'u8[4096]{0}', space=vmem, size = 0x1000, scoped, tag = 'output window, operand 0, single buffered']
    %6 = vsyncpa [#allocation3], 0
    %7 = vsyncpa [#allocation4], 0
    // Predicated region
    $region2: #{tpu_custom_call.1} parent=1 // pred_check
      _
    $region3: #{tpu_custom_call.1} parent=1 // pred_check_branch
      %9 = sbr.rel (0) target = $region5
    $region4: #{tpu_custom_call.1} parent=1 // pred_region
      %s11 = ssub.s32 128, 128
      %12 = vsyncadd [#allocation3], %s11
      %s14 = sshll.u32 [#allocation2], 4
      %s15 = int_to_ptr.vmem [resolvable:$true] %s14
      %17 = dma.hbm_to_vmem [thread:$0]  %s0, 128, %s15, [#allocation3]
    $region5: #{tpu_custom_call.1} parent=1 // pred_fallthru
      _
    // Predicated region
    $region6: #{tpu_custom_call.1} parent=1 // pred_check
      _
    $region7: #{tpu_custom_call.1} parent=1 // pred_check_branch
      %19 = sbr.rel (0) target = $region9
    $region8: #{tpu_custom_call.1} parent=1 // pred_region
      %20 = dma.done [#allocation3], 128
    $region9: #{tpu_custom_call.1} parent=1 // pred_fallthru
      _
    %v21 = vld [vmem:[#allocation2] sm:$0xff]
    %22 = vrot.lane.b32.xlu0 %v21, 1
    %v23 = vpop.permute.xlu0 %22
    %24 = vst [vmem:[#allocation5] sm:$0xff] %v23
    // Predicated region
    $region10: #{tpu_custom_call.1} parent=1 // pred_check
      _
    $region11: #{tpu_custom_call.1} parent=1 // pred_check_branch
      %26 = sbr.rel (0) target = $region13
    $region12: #{tpu_custom_call.1} parent=1 // pred_region
      %s28 = ssub.s32 128, 128
      %29 = vsyncadd [#allocation4], %s28
      %s31 = sshll.u32 [#allocation5], 4
      %s32 = int_to_ptr.vmem [resolvable:$true] %s31
      %34 = dma.vmem_to_hbm [thread:$0]  %s32, 128, %s1, [#allocation4]
    $region13: #{tpu_custom_call.1} parent=1 // pred_fallthru
      _
    // Predicated region
    $region14: #{tpu_custom_call.1} parent=1 // pred_check
      _
    $region15: #{tpu_custom_call.1} parent=1 // pred_check_branch
      %36 = sbr.rel (0) target = $region17
    $region16: #{tpu_custom_call.1} parent=1 // pred_region
      %37 = dma.done [#allocation4], 128
    $region17: #{tpu_custom_call.1} parent=1 // pred_fallthru
      _
    %38 = vsyncpa [#allocation3], 1
    %39 = vsyncpa [#allocation4], 1

</llo_original>
